<compile_context>
chip_gen: v7x
topology: tpu7x:2x2x1
jax: 0.10.0
libtpu: 0.0.40
codegen_flags: <defaults>
</compile_context>

<pallas_src>
import jax
import jax.numpy as jnp
from jax.experimental import pallas as pl
from jax.experimental.pallas import tpu as pltpu


def _normalizer_kernel(x_ref, scale_ref, bias_ref, o_ref):
    # x_ref:     (tm, Dk) tile of input rows (input dtype)
    # scale_ref: (1,  Dk) f32 broadcast row = 1/std
    # bias_ref:  (1,  Dk) f32 broadcast row = -mu/std
    x = x_ref[...].astype(jnp.float32)
    o_ref[...] = (x * scale_ref[...] + bias_ref[...]).astype(o_ref.dtype)


def normalizer_forward(x, mu, std, *, tm=None,
                       budget_bytes=4 * 1024 * 1024,
                       vmem_limit_bytes=48 * 1024 * 1024):
    """(x - mu) / std with mu/std of feature shape (D,), broadcast over leading dims."""
    D = x.shape[-1]
    assert mu.shape[-1] == D and std.shape[-1] == D

    orig_shape = x.shape
    out_dtype = x.dtype

    # Parameters must broadcast only over leading dims -> effectively 1-D (D,).
    mu_f = mu.astype(jnp.float32).reshape(-1)
    std_f = std.astype(jnp.float32).reshape(-1)
    assert mu_f.shape == (D,) and std_f.shape == (D,), \
        "mu/std must be (..., D) with singleton leading dims"

    inv_std = 1.0 / std_f
    bias = -mu_f * inv_std          # y = x * inv_std + bias == (x - mu) / std

    # Flatten leading dims into rows; features stay minor (lane axis).
    x2 = x.reshape(-1, D)
    M = x2.shape[0]

    # Layout choice (never adds HBM traffic):
    #   * D divides 128 and rows fold evenly -> fold rows into a 128-lane axis.
    #   * otherwise full-D blocks (block last dim == full array dim is legal).
    if D < 128 and 128 % D == 0 and (M * D) % 128 == 0:
        fold = 128 // D
        Dk = 128
        Mk = (M * D) // 128
        xk = x2.reshape(Mk, Dk)
        scale_row = jnp.tile(inv_std, fold).reshape(1, Dk)
        bias_row = jnp.tile(bias, fold).reshape(1, Dk)
    else:
        Dk, Mk, xk = D, M, x2
        scale_row = inv_std.reshape(1, Dk)
        bias_row = bias.reshape(1, Dk)

    # Dtype-aware row tile: ~budget_bytes of x per tile (out tile same size),
    # double-buffered by the auto-pipeline.  Multiple of 32 rows keeps bf16 /
    # int8 / fp8 sublane packs native; if the whole array fits in one tile use
    # the exact row count (block == full dim is always legal).
    itemsize = jnp.dtype(out_dtype).itemsize
    if tm is None:
        rows = budget_bytes // max(Dk * itemsize, 1)
        rows = max(32, (rows // 32) * 32)
        rows = min(rows, 8192)
        tm = Mk if Mk <= rows else rows
    # Note: pathologically wide D (feature dim ~1M) would need a second grid
    # axis over features; normal shapes never approach that.

    grid = (pl.cdiv(Mk, tm),)  # ragged last block: OOB reads padded, writes masked

    out = pl.pallas_call(
        _normalizer_kernel,
        out_shape=jax.ShapeDtypeStruct((Mk, Dk), out_dtype),
        grid_spec=pltpu.PrefetchScalarGridSpec(
            num_scalar_prefetch=0,
            grid=grid,
            in_specs=[
                pl.BlockSpec((tm, Dk), lambda i: (i, 0)),
                pl.BlockSpec((1, Dk), lambda i: (0, 0)),
                pl.BlockSpec((1, Dk), lambda i: (0, 0)),
            ],
            out_specs=pl.BlockSpec((tm, Dk), lambda i: (i, 0)),
        ),
        compiler_params=pltpu.CompilerParams(
            # "parallel" is the portable choice; on v7x (2 TCs) CORE_PARALLEL
            # on this axis would shard the row loop across both cores.
            dimension_semantics=("parallel",),
            vmem_limit_bytes=vmem_limit_bytes,
        ),
    )(xk, scale_row, bias_row)

    return out.reshape(orig_shape)


if __name__ == "__main__":
    key = jax.random.PRNGKey(0)
    k_x, k_mu, k_std, k_x2, k_mu2, k_std2 = jax.random.split(key, 6)

    # Small shapes consistent with the module: batch=2, seq=8, hidden=32.
    # (hidden=32 exercises the lane-folding path: 4 rows fold into 128 lanes.)
    B, S, D = 2, 8, 32
    x = jax.random.normal(k_x, (B, S, D), dtype=jnp.float32)
    mu = jax.random.normal(k_mu, (D,), dtype=jnp.float32)
    std = jax.random.uniform(k_std, (D,), dtype=jnp.float32, minval=0.5, maxval=1.5)

    out = normalizer_forward(x, mu, std)
    jax.block_until_ready(out)
    ref = (x - mu) / std
    assert out.shape == x.shape
    assert jnp.allclose(out, ref, atol=1e-5, rtol=1e-5)

    # Second check: feature dim that does not fold into 128 lanes (full-D
    # blocks) plus a ragged row grid (40 rows, tm=16 -> masked last block).
    D2 = 48
    x_b = jax.random.normal(k_x2, (5, 8, D2), dtype=jnp.float32)
    mu_b = jax.random.normal(k_mu2, (D2,), dtype=jnp.float32)
    std_b = jax.random.uniform(k_std2, (D2,), dtype=jnp.float32, minval=0.5, maxval=1.5)

    out_b = normalizer_forward(x_b, mu_b, std_b, tm=16)
    jax.block_until_ready(out_b)
    ref_b = (x_b - mu_b) / std_b
    assert jnp.allclose(out_b, ref_b, atol=1e-5, rtol=1e-5)

    print("KERNEL_OK")
</pallas_src>

<mosaic_0001>
module attributes {stable_mosaic.version = 11 : i64} {
  func.func @_normalizer_kernel(%arg0: i32, %arg1: memref<4x128xf32, #tpu.memory_space<vmem>>, %arg2: memref<1x128xf32, #tpu.memory_space<vmem>>, %arg3: memref<1x128xf32, #tpu.memory_space<vmem>>, %arg4: memref<4x128xf32, #tpu.memory_space<vmem>>) attributes {dimension_semantics = [#tpu.dimension_semantics<parallel>], iteration_bounds = array<i64: 1>, scalar_prefetch = 0 : i64, scratch_operands = 0 : i64, tpu.core_type = #tpu.core_type<tc>, window_params = [{transform_indices = @transform_0, window_bounds = array<i64: 4, 128>}, {pipeline_mode = #tpu.pipeline_mode<synchronous>, transform_indices = @transform_1, window_bounds = array<i64: 1, 128>}, {pipeline_mode = #tpu.pipeline_mode<synchronous>, transform_indices = @transform_2, window_bounds = array<i64: 1, 128>}, {transform_indices = @transform_3, window_bounds = array<i64: 4, 128>}]} {
    %c0 = arith.constant 0 : index
    %c0_0 = arith.constant 0 : index
    %0 = vector.load %arg1[%c0, %c0_0] : memref<4x128xf32, #tpu.memory_space<vmem>>, vector<4x128xf32>
    %c0_1 = arith.constant 0 : index
    %c0_2 = arith.constant 0 : index
    %1 = vector.load %arg2[%c0_1, %c0_2] : memref<1x128xf32, #tpu.memory_space<vmem>>, vector<1x128xf32>
    %2 = vector.broadcast %1 : vector<1x128xf32> to vector<4x128xf32>
    %3 = arith.mulf %0, %2 : vector<4x128xf32>
    %c0_3 = arith.constant 0 : index
    %c0_4 = arith.constant 0 : index
    %4 = vector.load %arg3[%c0_3, %c0_4] : memref<1x128xf32, #tpu.memory_space<vmem>>, vector<1x128xf32>
    %5 = vector.broadcast %4 : vector<1x128xf32> to vector<4x128xf32>
    %6 = arith.addf %3, %5 : vector<4x128xf32>
    %c0_5 = arith.constant 0 : index
    %c0_6 = arith.constant 0 : index
    %7 = vector.load %arg4[%c0_5, %c0_6] : memref<4x128xf32, #tpu.memory_space<vmem>>, vector<4x128xf32>
    tpu.vector_store %arg4[%c0_5, %c0_6], %6 {strides = array<i32>} : memref<4x128xf32, #tpu.memory_space<vmem>>, vector<4x128xf32>,
    return
  }
  func.func @transform_0(%arg0: i32) -> (i32, i32) {
    %c0_i32 = arith.constant 0 : i32
    %c0_i32_0 = arith.constant 0 : i32
    return %arg0, %c0_i32 : i32, i32
  }
  func.func @transform_1(%arg0: i32) -> (i32, i32) {
    %c0_i32 = arith.constant 0 : i32
    %c0_i32_0 = arith.constant 0 : i32
    %c0_i32_1 = arith.constant 0 : i32
    return %c0_i32, %c0_i32_0 : i32, i32
  }
  func.func @transform_2(%arg0: i32) -> (i32, i32) {
    %c0_i32 = arith.constant 0 : i32
    %c0_i32_0 = arith.constant 0 : i32
    %c0_i32_1 = arith.constant 0 : i32
    return %c0_i32, %c0_i32_0 : i32, i32
  }
  func.func @transform_3(%arg0: i32) -> (i32, i32) {
    %c0_i32 = arith.constant 0 : i32
    %c0_i32_0 = arith.constant 0 : i32
    return %arg0, %c0_i32 : i32, i32
  }
}

</mosaic_0001>

<llo_original>
// kernel: tpu_custom_call.1
$region0: #{tpu_custom_call.1}
  #allocation0 [shape = 'u32[]', space=smem, size = 0x4, offset = 0x4, fixed_abs, tag = 'smem constant byte address 0x4 - core index']
  #allocation1 [shape = 'u32[144,128]{1,0:T(1,128)}', space=vmem, size = 0x12000, scoped, tag = 'internal scratch']
  %s0 = inlined_call_operand.hbm [shape: f32[4,128], index: 0, kind: input, shape index: {}]
  %s1 = inlined_call_operand.vmem [shape: f32[1,128], index: 1, kind: input, shape index: {}]
  %s2 = inlined_call_operand.vmem [shape: f32[1,128], index: 2, kind: input, shape index: {}]
  %s3 = inlined_call_operand.hbm [shape: f32[4,128], index: 3, kind: output, shape index: {}]
  %s4 = sld [smem:[#allocation0]]
  $region26: #{tpu_custom_call.1} parent=0
    _
  %s6 = ssub.s32 1, %s4
  %s7 = scalar_select 0, %s6, %s4
  $region1: #{tpu_custom_call.1} parent=0
    #allocation2 [shape = 'u8[2048]{0}', space=vmem, size = 0x800, scoped, tag = 'input window, operand 0, single buffered']
    #allocation3 [shape = 's32[1]{0}', space=sflag, size = 0x4, scoped, tag = 'scoped memory for tpu_custom_call.1']
    #allocation4 [shape = 's32[1]{0}', space=sflag, size = 0x4, scoped, tag = 'scoped memory for tpu_custom_call.1']
    #allocation5 [shape = 'u8[2048]{0}', space=vmem, size = 0x800, scoped, tag = 'output window, operand 0, single buffered']
    %8 = vsyncpa [#allocation3], 0
    %9 = vsyncpa [#allocation4], 0
    // Predicated region
    $region2: #{tpu_custom_call.1} parent=1 // pred_check
      _
    $region3: #{tpu_custom_call.1} parent=1 // pred_check_branch
      %11 = sbr.rel (0) target = $region5
    $region4: #{tpu_custom_call.1} parent=1 // pred_region
      %s13 = ssub.s32 64, 64
      %14 = vsyncadd [#allocation3], %s13
      %s16 = sshll.u32 [#allocation2], 4
      %s17 = int_to_ptr.vmem [resolvable:$true] %s16
      %19 = dma.hbm_to_vmem [thread:$0]  %s0, 64, %s17, [#allocation3]
    $region5: #{tpu_custom_call.1} parent=1 // pred_fallthru
      _
    // Predicated region
    $region6: #{tpu_custom_call.1} parent=1 // pred_check
      _
    $region7: #{tpu_custom_call.1} parent=1 // pred_check_branch
      %21 = sbr.rel (0) target = $region9
    $region8: #{tpu_custom_call.1} parent=1 // pred_region
      _
    $region9: #{tpu_custom_call.1} parent=1 // pred_fallthru
      _
    // Predicated region
    $region10: #{tpu_custom_call.1} parent=1 // pred_check
      _
    $region11: #{tpu_custom_call.1} parent=1 // pred_check_branch
      %23 = sbr.rel (0) target = $region13
    $region12: #{tpu_custom_call.1} parent=1 // pred_region
      _
    $region13: #{tpu_custom_call.1} parent=1 // pred_fallthru
      _
    // Predicated region
    $region14: #{tpu_custom_call.1} parent=1 // pred_check
      _
    $region15: #{tpu_custom_call.1} parent=1 // pred_check_branch
      %25 = sbr.rel (0) target = $region17
    $region16: #{tpu_custom_call.1} parent=1 // pred_region
      %26 = dma.done [#allocation3], 64
    $region17: #{tpu_custom_call.1} parent=1 // pred_fallthru
      _
    %v27 = vld [vmem:[#allocation2] sm:$0xf]
    %v28 = vld [vmem:[%s1] sm:$0x1]
    %v30 = vlaneseq
    %v31 = vshrl.u32 %v30, 7
    %v32 = vsub.s32 0, %v31
    %v33 = vrot.slane %v28, %v32
    %v35 = vmul.f32 %v27, %v33
    %v36 = vld [vmem:[%s2] sm:$0x1]
    %v38 = vlaneseq
    %v39 = vshrl.u32 %v38, 7
    %v40 = vsub.s32 0, %v39
    %v41 = vrot.slane %v36, %v40
    %v43 = vadd.f32 %v35, %v41
    %44 = vst [vmem:[#allocation5] sm:$0xf] %v43
    // Predicated region
    $region18: #{tpu_custom_call.1} parent=1 // pred_check
      _
    $region19: #{tpu_custom_call.1} parent=1 // pred_check_branch
      %46 = sbr.rel (0) target = $region21
    $region20: #{tpu_custom_call.1} parent=1 // pred_region
      %s48 = ssub.s32 64, 64
      %49 = vsyncadd [#allocation4], %s48
      %s51 = sshll.u32 [#allocation5], 4
      %s52 = int_to_ptr.vmem [resolvable:$true] %s51
      %54 = dma.vmem_to_hbm [thread:$0]  %s52, 64, %s3, [#allocation4]
    $region21: #{tpu_custom_call.1} parent=1 // pred_fallthru
      _
    // Predicated region
    $region22: #{tpu_custom_call.1} parent=1 // pred_check
      _
    $region23: #{tpu_custom_call.1} parent=1 // pred_check_branch
      %56 = sbr.rel (0) target = $region25
    $region24: #{tpu_custom_call.1} parent=1 // pred_region
      %57 = dma.done [#allocation4], 64
    $region25: #{tpu_custom_call.1} parent=1 // pred_fallthru
      _
    %58 = vsyncpa [#allocation3], 1
    %59 = vsyncpa [#allocation4], 1

</llo_original>
